<compile_context>
chip_gen: v7x
topology: tpu7x:2x2x1
jax: 0.10.0
libtpu: 0.0.40
codegen_flags: <defaults>
</compile_context>

<pallas_src>
import jax
import jax.numpy as jnp
from jax.experimental import pallas as pl
from jax.experimental.pallas import tpu as pltpu


# ---------------------------------------------------------------------------
# Kernels
# ---------------------------------------------------------------------------

def _mlp(xn_f32, w1_ref, b1_ref, w2_ref, b2_ref, o_ref):
    # Feed the MXU in the weights' storage dtype (bf16-native on v6e/v7x), accumulate f32.
    h = jnp.dot(xn_f32.astype(w1_ref.dtype), w1_ref[...],
                preferred_element_type=jnp.float32)
    h = jnp.maximum(h + b1_ref[...].astype(jnp.float32), 0.0)      # bias + ReLU (VPU)
    out = jnp.dot(h.astype(w2_ref.dtype), w2_ref[...],
                  preferred_element_type=jnp.float32)
    o_ref[...] = (out + b2_ref[...].astype(jnp.float32)).astype(o_ref.dtype)


def _denoiser_kernel_noisy(nl_ref, x_ref, n_ref, w1_ref, b1_ref, w2_ref, b2_ref, o_ref):
    # nl_ref: (1,) f32 scalar in SMEM.  x_ref / n_ref / o_ref: (tb, D) VMEM tiles.
    # Noise injection in f32 on the VPU (v5e-safe; avoids bf16 quantizing small noise).
    xn = x_ref[...].astype(jnp.float32) + n_ref[...].astype(jnp.float32) * nl_ref[0]
    _mlp(xn, w1_ref, b1_ref, w2_ref, b2_ref, o_ref)


def _denoiser_kernel_clean(x_ref, w1_ref, b1_ref, w2_ref, b2_ref, o_ref):
    # noise_level == 0 path: no noise stream, no noise math.
    _mlp(x_ref[...].astype(jnp.float32), w1_ref, b1_ref, w2_ref, b2_ref, o_ref)


# ---------------------------------------------------------------------------
# Generation-aware configuration helpers
# ---------------------------------------------------------------------------

def _tpu_info():
    """(vmem_capacity_bytes, tensorcores_per_chip) with safe fallbacks."""
    cap = 128 * 1024 * 1024
    cores = 1
    try:
        info = pltpu.get_tpu_info()
        cap = int(getattr(info, "vmem_capacity_bytes", cap))
        for name in ("num_cores", "num_cores_per_chip", "tensorcores_per_chip",
                     "core_count"):
            v = getattr(info, name, None)
            if isinstance(v, int) and v > 0:
                cores = v
                break
    except Exception:
        pass
    return cap, max(1, min(2, cores))


def _single_buffer_kwargs():
    """pipeline_mode=pl.Buffered(1) for constant-index-map weights, if supported."""
    if not hasattr(pl, "Buffered"):
        return {}
    try:
        pl.BlockSpec((8, 128), lambda i: (0, 0), pipeline_mode=pl.Buffered(1))
        return {"pipeline_mode": pl.Buffered(1)}
    except TypeError:
        return {}


_SB = _single_buffer_kwargs()


def _resident_spec(shape):
    zeros = (0,) * len(shape)
    return pl.BlockSpec(shape, lambda i, _z=zeros: _z, **_SB)


def _choose_tile(B, D, H, itemsize, budget, has_noise, num_cores):
    """Largest sublane-packing-aligned batch tile that fits the VMEM budget.
    No forced splits on single-TC chips; >=4 steps/core targeted when 2 TCs exist."""
    align = 8 * max(1, 4 // itemsize)        # f32: 8, bf16: 16, int8/fp8: 32
    if B <= align:
        return B
    n_io = 3 if has_noise else 2             # x (+ noise) + out streams

    def est(t):
        return (2 * n_io * t * D * itemsize                  # double-buffered I/O tiles
                + (D * H + H * D + H + D) * itemsize         # single-buffered weights
                + 4 * t * (3 * D + 2 * H))                   # f32 in-body temporaries

    tb = (min(B, 8192) // align) * align
    while tb > align and est(tb) > budget:
        tb = max(align, ((tb // 2) // align) * align)

    if num_cores > 1:
        # Megacore (v7x): aim for >=4 grid steps per core so each TC's BlockSpec
        # pipeline overlaps DMA with compute, but keep per-step I/O >= ~1 MiB.
        min_tb = max(align, (1 << 20) // (n_io * D * itemsize))
        min_tb = ((min_tb + align - 1) // align) * align
        if B >= 2 * min_tb:
            want = max(align, (-(-B // (4 * num_cores)) // align) * align)
            tb = min(tb, max(min_tb, want))
    return tb


# ---------------------------------------------------------------------------
# Wrapper
# ---------------------------------------------------------------------------

def diffusion_forward(x, w1, b1, w2, b2, noise_level=0.1, seed=0):
    B, D = x.shape
    H = w1.shape[1]
    itemsize = jnp.dtype(x.dtype).itemsize
    has_noise = float(noise_level) != 0.0

    vmem_cap, num_cores = _tpu_info()
    budget = (vmem_cap * 3) // 4                                   # ~96 MiB on 128, ~48 on 64
    vmem_limit = int(min(vmem_cap - (4 << 20), budget + (16 << 20)))

    tb = _choose_tile(B, D, H, itemsize, budget, has_noise, num_cores)
    grid = (pl.cdiv(B, tb),)
    # Note: when B % tb != 0 the padded rows of the last tile are computed on undefined
    # data; both matmuls are row-independent and the writeback is masked, so results
    # stay correct (just a little wasted work).

    io_spec = pl.BlockSpec((tb, D), lambda i: (i, 0))
    w_specs = [_resident_spec((D, H)), _resident_spec((1, H)),
               _resident_spec((H, D)), _resident_spec((1, D))]

    n_streams = 3 if has_noise else 2
    cost = pl.CostEstimate(
        flops=4 * B * D * H,
        transcendentals=0,
        bytes_accessed=int(n_streams * B * D * itemsize
                           + (D * H + H * D + H + D) * itemsize),
    )
    cparams = pltpu.CompilerParams(dimension_semantics=("parallel",),
                                   vmem_limit_bytes=vmem_limit)

    if has_noise:
        # TODO(synk): in-kernel noise via pltpu.prng_seed/stateful_normal would remove
        # this HBM stream entirely, but those primitives have no CPU/interpret lowering;
        # noise is generated host-side (matches torch.randn_like(x) * noise_level).
        noise = jax.random.normal(jax.random.PRNGKey(seed), (B, D),
                                  jnp.float32).astype(x.dtype)
        nl = jnp.asarray([noise_level], dtype=jnp.float32)   # runtime SMEM scalar
        kernel = _denoiser_kernel_noisy
        in_specs = [pl.BlockSpec(memory_space=pltpu.MemorySpace.SMEM),  # noise_level
                    io_spec,                                            # x tile
                    pl.BlockSpec((tb, D), lambda i: (i, 0)),            # noise tile
                    *w_specs]
        args = (nl, x, noise, w1, b1, w2, b2)
    else:
        kernel = _denoiser_kernel_clean
        in_specs = [io_spec, *w_specs]
        args = (x, w1, b1, w2, b2)

    return pl.pallas_call(
        kernel,
        out_shape=jax.ShapeDtypeStruct((B, D), x.dtype),
        grid_spec=pltpu.PrefetchScalarGridSpec(
            num_scalar_prefetch=0,
            grid=grid,
            in_specs=in_specs,
            out_specs=pl.BlockSpec((tb, D), lambda i: (i, 0)),
        ),
        compiler_params=cparams,
        cost_estimate=cost,
    )(*args)


def init_params(key, input_dim, hidden_dim, dtype=jnp.float32):
    # Deterministic init mimicking nn.Linear's U(-1/sqrt(fan_in), 1/sqrt(fan_in)).
    k1, k2, k3, k4 = jax.random.split(key, 4)
    lim1 = 1.0 / (input_dim ** 0.5)
    lim2 = 1.0 / (hidden_dim ** 0.5)
    w1 = jax.random.uniform(k1, (input_dim, hidden_dim), dtype, -lim1, lim1)
    b1 = jax.random.uniform(k2, (1, hidden_dim), dtype, -lim1, lim1)
    w2 = jax.random.uniform(k3, (hidden_dim, input_dim), dtype, -lim2, lim2)
    b2 = jax.random.uniform(k4, (1, input_dim), dtype, -lim2, lim2)
    return w1, b1, w2, b2


if __name__ == "__main__":
    key = jax.random.PRNGKey(0)
    k_x, k_params = jax.random.split(key, 2)

    batch, input_dim, hidden_dim = 8, 16, 32

    x = jax.random.normal(k_x, (batch, input_dim), jnp.float32)
    w1, b1, w2, b2 = init_params(k_params, input_dim, hidden_dim)

    # 1) noise_level = 0 -> exact match against the pure-JAX reference (clean kernel).
    out_clean = jax.block_until_ready(
        diffusion_forward(x, w1, b1, w2, b2, noise_level=0.0))
    ref = jnp.maximum(x @ w1 + b1, 0.0) @ w2 + b2
    assert out_clean.shape == (batch, input_dim)
    assert jnp.allclose(out_clean, ref, atol=1e-5, rtol=1e-5)

    # 2) noise_level = 0.1 -> noisy kernel (torch.randn_like path).
    out_noisy = jax.block_until_ready(
        diffusion_forward(x, w1, b1, w2, b2, noise_level=0.1, seed=1234))
    assert out_noisy.shape == (batch, input_dim)
    assert bool(jnp.all(jnp.isfinite(out_noisy)))
    assert not jnp.allclose(out_noisy, out_clean, atol=1e-4)

    # 3) bf16 storage path (recommended HBM-byte lever on v6e/v7x); elementwise stays f32.
    out_bf16 = jax.block_until_ready(
        diffusion_forward(x.astype(jnp.bfloat16),
                          w1.astype(jnp.bfloat16), b1.astype(jnp.bfloat16),
                          w2.astype(jnp.bfloat16), b2.astype(jnp.bfloat16),
                          noise_level=0.0))
    assert jnp.allclose(out_bf16.astype(jnp.float32), ref, atol=0.1, rtol=0.1)

    print("KERNEL_OK")
</pallas_src>

<mosaic_0001>
module attributes {stable_mosaic.version = 11 : i64} {
  func.func @_denoiser_kernel_clean(%arg0: i32, %arg1: memref<8x16xf32, #tpu.memory_space<vmem>>, %arg2: memref<16x32xf32, #tpu.memory_space<vmem>>, %arg3: memref<1x32xf32, #tpu.memory_space<vmem>>, %arg4: memref<32x16xf32, #tpu.memory_space<vmem>>, %arg5: memref<1x16xf32, #tpu.memory_space<vmem>>, %arg6: memref<8x16xf32, #tpu.memory_space<vmem>>) attributes {dimension_semantics = [#tpu.dimension_semantics<parallel>], iteration_bounds = array<i64: 1>, scalar_prefetch = 0 : i64, scratch_operands = 0 : i64, tpu.core_type = #tpu.core_type<tc>, window_params = [{transform_indices = @transform_0, window_bounds = array<i64: 8, 16>}, {pipeline_mode = #tpu.pipeline_mode<synchronous>, transform_indices = @transform_1, window_bounds = array<i64: 16, 32>}, {pipeline_mode = #tpu.pipeline_mode<synchronous>, transform_indices = @transform_2, window_bounds = array<i64: 1, 32>}, {pipeline_mode = #tpu.pipeline_mode<synchronous>, transform_indices = @transform_3, window_bounds = array<i64: 32, 16>}, {pipeline_mode = #tpu.pipeline_mode<synchronous>, transform_indices = @transform_4, window_bounds = array<i64: 1, 16>}, {transform_indices = @transform_5, window_bounds = array<i64: 8, 16>}]} {
    %c0 = arith.constant 0 : index
    %c0_0 = arith.constant 0 : index
    %0 = vector.load %arg1[%c0, %c0_0] : memref<8x16xf32, #tpu.memory_space<vmem>>, vector<8x16xf32>
    %c0_1 = arith.constant 0 : index
    %c0_2 = arith.constant 0 : index
    %1 = vector.load %arg2[%c0_1, %c0_2] : memref<16x32xf32, #tpu.memory_space<vmem>>, vector<16x32xf32>
    %cst = arith.constant dense<0.000000e+00> : vector<8x32xf32>
    %2 = tpu.matmul %0, %1, %cst {dimension_numbers = #tpu.dot_dimension_numbers<[1], [0], [0], [1], [0, 0, 1, 1], [], []>} : vector<8x16xf32>, vector<16x32xf32>, vector<8x32xf32> -> vector<8x32xf32>
    %c0_3 = arith.constant 0 : index
    %c0_4 = arith.constant 0 : index
    %3 = vector.load %arg3[%c0_3, %c0_4] : memref<1x32xf32, #tpu.memory_space<vmem>>, vector<1x32xf32>
    %4 = vector.broadcast %3 : vector<1x32xf32> to vector<8x32xf32>
    %5 = arith.addf %2, %4 : vector<8x32xf32>
    %cst_5 = arith.constant 0.000000e+00 : f32
    %6 = vector.broadcast %cst_5 : f32 to vector<8x32xf32>
    %7 = arith.maximumf %5, %6 : vector<8x32xf32>
    %c0_6 = arith.constant 0 : index
    %c0_7 = arith.constant 0 : index
    %8 = vector.load %arg4[%c0_6, %c0_7] : memref<32x16xf32, #tpu.memory_space<vmem>>, vector<32x16xf32>
    %cst_8 = arith.constant dense<0.000000e+00> : vector<8x16xf32>
    %9 = tpu.matmul %7, %8, %cst_8 {dimension_numbers = #tpu.dot_dimension_numbers<[1], [0], [0], [1], [0, 0, 1, 1], [], []>} : vector<8x32xf32>, vector<32x16xf32>, vector<8x16xf32> -> vector<8x16xf32>
    %c0_9 = arith.constant 0 : index
    %c0_10 = arith.constant 0 : index
    %10 = vector.load %arg5[%c0_9, %c0_10] : memref<1x16xf32, #tpu.memory_space<vmem>>, vector<1x16xf32>
    %11 = vector.broadcast %10 : vector<1x16xf32> to vector<8x16xf32>
    %12 = arith.addf %9, %11 : vector<8x16xf32>
    %c0_11 = arith.constant 0 : index
    %c0_12 = arith.constant 0 : index
    %13 = vector.load %arg6[%c0_11, %c0_12] : memref<8x16xf32, #tpu.memory_space<vmem>>, vector<8x16xf32>
    tpu.vector_store %arg6[%c0_11, %c0_12], %12 {strides = array<i32>} : memref<8x16xf32, #tpu.memory_space<vmem>>, vector<8x16xf32>,
    return
  }
  func.func @transform_0(%arg0: i32) -> (i32, i32) {
    %c0_i32 = arith.constant 0 : i32
    %c0_i32_0 = arith.constant 0 : i32
    return %arg0, %c0_i32 : i32, i32
  }
  func.func @transform_1(%arg0: i32) -> (i32, i32) {
    %c0_i32 = arith.constant 0 : i32
    %c0_i32_0 = arith.constant 0 : i32
    %c0_i32_1 = arith.constant 0 : i32
    return %c0_i32, %c0_i32_0 : i32, i32
  }
  func.func @transform_2(%arg0: i32) -> (i32, i32) {
    %c0_i32 = arith.constant 0 : i32
    %c0_i32_0 = arith.constant 0 : i32
    %c0_i32_1 = arith.constant 0 : i32
    return %c0_i32, %c0_i32_0 : i32, i32
  }
  func.func @transform_3(%arg0: i32) -> (i32, i32) {
    %c0_i32 = arith.constant 0 : i32
    %c0_i32_0 = arith.constant 0 : i32
    %c0_i32_1 = arith.constant 0 : i32
    return %c0_i32, %c0_i32_0 : i32, i32
  }
  func.func @transform_4(%arg0: i32) -> (i32, i32) {
    %c0_i32 = arith.constant 0 : i32
    %c0_i32_0 = arith.constant 0 : i32
    %c0_i32_1 = arith.constant 0 : i32
    return %c0_i32, %c0_i32_0 : i32, i32
  }
  func.func @transform_5(%arg0: i32) -> (i32, i32) {
    %c0_i32 = arith.constant 0 : i32
    %c0_i32_0 = arith.constant 0 : i32
    return %arg0, %c0_i32 : i32, i32
  }
}

</mosaic_0001>

<llo_original>
// kernel: tpu_custom_call.1
$region0: #{tpu_custom_call.1}
  #allocation0 [shape = 'u32[]', space=smem, size = 0x4, offset = 0x4, fixed_abs, tag = 'smem constant byte address 0x4 - core index']
  #allocation1 [shape = 'u32[144,128]{1,0:T(1,128)}', space=vmem, size = 0x12000, scoped, tag = 'internal scratch']
  %s0 = inlined_call_operand.hbm [shape: f32[8,16], index: 0, kind: input, shape index: {}]
  %s1 = inlined_call_operand.hbm [shape: f32[16,32], index: 1, kind: input, shape index: {}]
  %s2 = inlined_call_operand.hbm [shape: f32[1,32], index: 2, kind: input, shape index: {}]
  %s3 = inlined_call_operand.hbm [shape: f32[32,16], index: 3, kind: input, shape index: {}]
  %s4 = inlined_call_operand.hbm [shape: f32[1,16], index: 4, kind: input, shape index: {}]
  %s5 = inlined_call_operand.hbm [shape: f32[8,16], index: 5, kind: output, shape index: {}]
  %s6 = sld [smem:[#allocation0]]
  $region50: #{tpu_custom_call.1} parent=0
    _
  %s8 = ssub.s32 1, %s6
  %s9 = scalar_select 0, %s8, %s6
  $region1: #{tpu_custom_call.1} parent=0
    #allocation2 [shape = 'u8[4096]{0}', space=vmem, size = 0x1000, scoped, tag = 'input window, operand 0, single buffered']
    #allocation3 [shape = 's32[1]{0}', space=sflag, size = 0x4, scoped, tag = 'scoped memory for tpu_custom_call.1']
    #allocation4 [shape = 's32[1]{0}', space=sflag, size = 0x4, scoped, tag = 'scoped memory for tpu_custom_call.1']
    #allocation5 [shape = 'u8[8192]{0}', space=vmem, size = 0x2000, scoped, tag = 'input window, operand 1, single buffered']
    #allocation6 [shape = 's32[1]{0}', space=sflag, size = 0x4, scoped, tag = 'scoped memory for tpu_custom_call.1']
    #allocation7 [shape = 'u8[512]{0}', space=vmem, size = 0x400, scoped, tag = 'input window, operand 2, single buffered']
    #allocation8 [shape = 'u8[16384]{0}', space=vmem, size = 0x4000, scoped, tag = 'input window, operand 3, single buffered']
    #allocation9 [shape = 's32[1]{0}', space=sflag, size = 0x4, scoped, tag = 'scoped memory for tpu_custom_call.1']
    #allocation10 [shape = 'u8[512]{0}', space=vmem, size = 0x400, scoped, tag = 'input window, operand 4, single buffered']
    #allocation11 [shape = 'u8[4096]{0}', space=vmem, size = 0x1000, scoped, tag = 'output window, operand 0, single buffered']
    %10 = vsyncpa [#allocation3], 0
    %11 = vsyncpa [#allocation6], 0
    %12 = vsyncpa [#allocation9], 0
    %13 = vsyncpa [#allocation4], 0
    // Predicated region
    $region2: #{tpu_custom_call.1} parent=1 // pred_check
      _
    $region3: #{tpu_custom_call.1} parent=1 // pred_check_branch
      %15 = sbr.rel (0) target = $region5
    $region4: #{tpu_custom_call.1} parent=1 // pred_region
      %s17 = ssub.s32 128, 128
      %18 = vsyncadd [#allocation3], %s17
      %s20 = sshll.u32 [#allocation2], 4
      %s21 = int_to_ptr.vmem [resolvable:$true] %s20
      %23 = dma.hbm_to_vmem [thread:$0]  %s0, 128, %s21, [#allocation3]
    $region5: #{tpu_custom_call.1} parent=1 // pred_fallthru
      _
    // Predicated region
    $region6: #{tpu_custom_call.1} parent=1 // pred_check
      _
    $region7: #{tpu_custom_call.1} parent=1 // pred_check_branch
      %25 = sbr.rel (0) target = $region9
    $region8: #{tpu_custom_call.1} parent=1 // pred_region
      %s27 = ssub.s32 256, 256
      %28 = vsyncadd [#allocation6], %s27
      %s29 = sshll.u32 [#allocation5], 4
      %s30 = int_to_ptr.vmem [resolvable:$true] %s29
      %35 = dma.hbm_to_vmem [thread:$0]  %s1, 256, %s30, [#allocation6], 128, 128, 8
    $region9: #{tpu_custom_call.1} parent=1 // pred_fallthru
      _
    // Predicated region
    $region10: #{tpu_custom_call.1} parent=1 // pred_check
      _
    $region11: #{tpu_custom_call.1} parent=1 // pred_check_branch
      %37 = sbr.rel (0) target = $region13
    $region12: #{tpu_custom_call.1} parent=1 // pred_region
      %s39 = ssub.s32 16, 16
      %40 = vsyncadd [#allocation6], %s39
      %s42 = sshll.u32 [#allocation7], 4
      %s43 = int_to_ptr.vmem [resolvable:$true] %s42
      %45 = dma.hbm_to_vmem [thread:$0]  %s2, 16, %s43, [#allocation6]
    $region13: #{tpu_custom_call.1} parent=1 // pred_fallthru
      _
    // Predicated region
    $region14: #{tpu_custom_call.1} parent=1 // pred_check
      _
    $region15: #{tpu_custom_call.1} parent=1 // pred_check_branch
      %47 = sbr.rel (0) target = $region17
    $region16: #{tpu_custom_call.1} parent=1 // pred_region
      %s49 = ssub.s32 512, 512
      %50 = vsyncadd [#allocation9], %s49
      %s51 = sshll.u32 [#allocation8], 4
      %s52 = int_to_ptr.vmem [resolvable:$true] %s51
      %57 = dma.hbm_to_vmem [thread:$0]  %s3, 512, %s52, [#allocation9], 128, 128, 8
    $region17: #{tpu_custom_call.1} parent=1 // pred_fallthru
      _
    // Predicated region
    $region18: #{tpu_custom_call.1} parent=1 // pred_check
      _
    $region19: #{tpu_custom_call.1} parent=1 // pred_check_branch
      %59 = sbr.rel (0) target = $region21
    $region20: #{tpu_custom_call.1} parent=1 // pred_region
      %s61 = ssub.s32 16, 16
      %62 = vsyncadd [#allocation9], %s61
      %s64 = sshll.u32 [#allocation10], 4
      %s65 = int_to_ptr.vmem [resolvable:$true] %s64
      %67 = dma.hbm_to_vmem [thread:$0]  %s4, 16, %s65, [#allocation9]
    $region21: #{tpu_custom_call.1} parent=1 // pred_fallthru
      _
    // Predicated region
    $region22: #{tpu_custom_call.1} parent=1 // pred_check
      _
    $region23: #{tpu_custom_call.1} parent=1 // pred_check_branch
      %69 = sbr.rel (0) target = $region25
    $region24: #{tpu_custom_call.1} parent=1 // pred_region
      %70 = dma.done [#allocation3], 128
    $region25: #{tpu_custom_call.1} parent=1 // pred_fallthru
      _
    // Predicated region
    $region26: #{tpu_custom_call.1} parent=1 // pred_check
      _
    $region27: #{tpu_custom_call.1} parent=1 // pred_check_branch
      %72 = sbr.rel (0) target = $region29
    $region28: #{tpu_custom_call.1} parent=1 // pred_region
      %73 = dma.done [#allocation6], 256
    $region29: #{tpu_custom_call.1} parent=1 // pred_fallthru
      _
    // Predicated region
    $region30: #{tpu_custom_call.1} parent=1 // pred_check
      _
    $region31: #{tpu_custom_call.1} parent=1 // pred_check_branch
      %75 = sbr.rel (0) target = $region33
    $region32: #{tpu_custom_call.1} parent=1 // pred_region
      %76 = dma.done [#allocation6], 16
    $region33: #{tpu_custom_call.1} parent=1 // pred_fallthru
      _
    // Predicated region
    $region34: #{tpu_custom_call.1} parent=1 // pred_check
      _
    $region35: #{tpu_custom_call.1} parent=1 // pred_check_branch
      %78 = sbr.rel (0) target = $region37
    $region36: #{tpu_custom_call.1} parent=1 // pred_region
      %79 = dma.done [#allocation9], 512
    $region37: #{tpu_custom_call.1} parent=1 // pred_fallthru
      _
    // Predicated region
    $region38: #{tpu_custom_call.1} parent=1 // pred_check
      _
    $region39: #{tpu_custom_call.1} parent=1 // pred_check_branch
      %81 = sbr.rel (0) target = $region41
    $region40: #{tpu_custom_call.1} parent=1 // pred_region
      %82 = dma.done [#allocation9], 16
    $region41: #{tpu_custom_call.1} parent=1 // pred_fallthru
      _
    %v83 = vld [vmem:[#allocation2] sm:$0xff]
    %v84 = vld [vmem:[#allocation5] sm:$0xff]
    %v85 = vld [vmem:[#allocation5 + $0x8] sm:$0xff]
    %v86 = vld [vmem:[#allocation7] sm:$0x1]
    %v88 = vlaneseq
    %v89 = vshrl.u32 %v88, 7
    %v90 = vsub.s32 0, %v89
    %v91 = vrot.slane %v86, %v90
    %vm93 = vcmask 130048
    %v95 = vsel %vm93, %v83, 0
    %97 = vmatprep.subr.mxu0 0.0
    %98 = vmatpush1.msra.mxu0 %v84
    %99 = vmatprep.subr.mxu0 0.0
    %100 = vmatpush1.msra.mxu0 %v85
    %101 = vmatprep.subr.mxu0 0.0
    %102 = vmatpush1.msra.mxu0 0.0
    %103 = vmatprep.subr.mxu0 0.0
    %104 = vmatpush1.msra.mxu0 0.0
    %105 = vmatprep.subr.mxu0 0.0
    %106 = vmatpush1.msra.mxu0 0.0
    %107 = vmatprep.subr.mxu0 0.0
    %108 = vmatpush1.msra.mxu0 0.0
    %109 = vmatprep.subr.mxu0 0.0
    %110 = vmatpush1.msra.mxu0 0.0
    %111 = vmatprep.subr.mxu0 0.0
    %112 = vmatpush1.msra.mxu0 0.0
    %113 = vmatprep.subr.mxu0 0.0
    %114 = vmatpush1.msra.mxu0 0.0
    %115 = vmatprep.subr.mxu0 0.0
    %116 = vmatpush1.msra.mxu0 0.0
    %117 = vmatprep.subr.mxu0 0.0
    %118 = vmatpush1.msra.mxu0 0.0
    %119 = vmatprep.subr.mxu0 0.0
    %120 = vmatpush1.msra.mxu0 0.0
    %121 = vmatprep.subr.mxu0 0.0
    %122 = vmatpush1.msra.mxu0 0.0
    %123 = vmatprep.subr.mxu0 0.0
    %124 = vmatpush1.msra.mxu0 0.0
    %125 = vmatprep.subr.mxu0 0.0
    %126 = vmatpush1.msra.mxu0 0.0
    %127 = vmatprep.subr.mxu0 0.0
    %128 = vmatpush1.msra.mxu0 0.0
    %129 = vmatprep.subr.mxu0 0.0
    %130 = vmatpush1.msra.mxu0 0.0
    %131 = vmatprep.subr.mxu0 0.0
    %132 = vmatpush1.msra.mxu0 0.0
    %133 = vmatprep.subr.mxu0 0.0
    %134 = vmatpush1.msra.mxu0 0.0
    %135 = vmatprep.subr.mxu0 0.0
    %136 = vmatpush1.msra.mxu0 0.0
    %137 = vmatprep.subr.mxu0 0.0
    %138 = vmatpush1.msra.mxu0 0.0
    %139 = vmatprep.subr.mxu0 0.0
    %140 = vmatpush1.msra.mxu0 0.0
    %141 = vmatprep.subr.mxu0 0.0
    %142 = vmatpush1.msra.mxu0 0.0
    %143 = vmatprep.subr.mxu0 0.0
    %144 = vmatpush1.msra.mxu0 0.0
    %145 = vmatprep.subr.mxu0 0.0
    %146 = vmatpush1.msra.mxu0 0.0
    %147 = vmatprep.subr.mxu0 0.0
    %148 = vmatpush1.msra.mxu0 0.0
    %149 = vmatprep.subr.mxu0 0.0
    %150 = vmatpush1.msra.mxu0 0.0
    %151 = vmatprep.subr.mxu0 0.0
    %152 = vmatpush1.msra.mxu0 0.0
    %153 = vmatprep.subr.mxu0 0.0
    %154 = vmatpush1.msra.mxu0 0.0
    %155 = vmatprep.subr.mxu0 0.0
    %156 = vmatpush1.msra.mxu0 0.0
    %157 = vmatprep.subr.mxu0 0.0
    %158 = vmatpush1.msra.mxu0 0.0
    %159 = vmatprep.subr.mxu0 0.0
    %160 = vmatpush1.msra.mxu0 0.0
    %161 = vmatprep.mubr.f32.mxu0 0.0
    %162 = vmatmul.mubr.f32.gmra.mrb[0].mxu0 %v95
    %v163 = vpop.f32.mrb[0].mxu0
    %v164 = vadd.f32 %v91, %v163
    %v165 = vpop.f32.mrb[0].mxu0
    %166 = vdwg.mxu0
    %v167 = vmax.f32 %v164, 0.0
    %v168 = vld [vmem:[#allocation8] sm:$0xff]
    %v169 = vld [vmem:[#allocation8 + $0x8] sm:$0xff]
    %v170 = vld [vmem:[#allocation8 + $0x10] sm:$0xff]
    %v171 = vld [vmem:[#allocation8 + $0x18] sm:$0xff]
    %v172 = vld [vmem:[#allocation10] sm:$0x1]
    %v174 = vlaneseq
    %v175 = vshrl.u32 %v174, 7
    %v176 = vsub.s32 0, %v175
    %v177 = vrot.slane %v172, %v176
    %vm179 = vcmask 261120
    %v181 = vsel %vm179, %v167, 0
    %183 = vmatprep.subr.mxu0 0.0
    %184 = vmatpush1.msra.mxu0 %v168
    %185 = vmatprep.subr.mxu0 0.0
    %186 = vmatpush1.msra.mxu0 %v169
    %187 = vmatprep.subr.mxu0 0.0
    %188 = vmatpush1.msra.mxu0 %v170
    %189 = vmatprep.subr.mxu0 0.0
    %190 = vmatpush1.msra.mxu0 %v171
    %191 = vmatprep.subr.mxu0 0.0
    %192 = vmatpush1.msra.mxu0 0.0
    %193 = vmatprep.subr.mxu0 0.0
    %194 = vmatpush1.msra.mxu0 0.0
    %195 = vmatprep.subr.mxu0 0.0
    %196 = vmatpush1.msra.mxu0 0.0
    %197 = vmatprep.subr.mxu0 0.0
    %198 = vmatpush1.msra.mxu0 0.0
    %199 = vmatprep.subr.mxu0 0.0
    %200 = vmatpush1.msra.mxu0 0.0
    %201 = vmatprep.subr.mxu0 0.0
    %202 = vmatpush1.msra.mxu0 0.0
    %203 = vmatprep.subr.mxu0 0.0
    %204 = vmatpush1.msra.mxu0 0.0
    %205 = vmatprep.subr.mxu0 0.0
    %206 = vmatpush1.msra.mxu0 0.0
    %207 = vmatprep.subr.mxu0 0.0
    %208 = vmatpush1.msra.mxu0 0.0
    %209 = vmatprep.subr.mxu0 0.0
    %210 = vmatpush1.msra.mxu0 0.0
    %211 = vmatprep.subr.mxu0 0.0
    %212 = vmatpush1.msra.mxu0 0.0
    %213 = vmatprep.subr.mxu0 0.0
    %214 = vmatpush1.msra.mxu0 0.0
    %215 = vmatprep.subr.mxu0 0.0
    %216 = vmatpush1.msra.mxu0 0.0
    %217 = vmatprep.subr.mxu0 0.0
    %218 = vmatpush1.msra.mxu0 0.0
    %219 = vmatprep.subr.mxu0 0.0
    %220 = vmatpush1.msra.mxu0 0.0
    %221 = vmatprep.subr.mxu0 0.0
    %222 = vmatpush1.msra.mxu0 0.0
    %223 = vmatprep.subr.mxu0 0.0
    %224 = vmatpush1.msra.mxu0 0.0
    %225 = vmatprep.subr.mxu0 0.0
    %226 = vmatpush1.msra.mxu0 0.0
    %227 = vmatprep.subr.mxu0 0.0
    %228 = vmatpush1.msra.mxu0 0.0
    %229 = vmatprep.subr.mxu0 0.0
    %230 = vmatpush1.msra.mxu0 0.0
    %231 = vmatprep.subr.mxu0 0.0
    %232 = vmatpush1.msra.mxu0 0.0
    %233 = vmatprep.subr.mxu0 0.0
    %234 = vmatpush1.msra.mxu0 0.0
    %235 = vmatprep.subr.mxu0 0.0
    %236 = vmatpush1.msra.mxu0 0.0
    %237 = vmatprep.subr.mxu0 0.0
    %238 = vmatpush1.msra.mxu0 0.0
    %239 = vmatprep.subr.mxu0 0.0
    %240 = vmatpush1.msra.mxu0 0.0
    %241 = vmatprep.subr.mxu0 0.0
    %242 = vmatpush1.msra.mxu0 0.0
    %243 = vmatprep.subr.mxu0 0.0
    %244 = vmatpush1.msra.mxu0 0.0
    %245 = vmatprep.subr.mxu0 0.0
    %246 = vmatpush1.msra.mxu0 0.0
    %247 = vmatprep.mubr.f32.mxu0 0.0
    %248 = vmatmul.mubr.f32.gmra.mrb[0].mxu0 %v181
    %v249 = vpop.f32.mrb[0].mxu0
    %v250 = vadd.f32 %v177, %v249
    %v251 = vpop.f32.mrb[0].mxu0
    %252 = vdwg.mxu0
    %253 = vst.msk [vmem:[#allocation11] sm:$0xff] %vm93, %v250
    // Predicated region
    $region42: #{tpu_custom_call.1} parent=1 // pred_check
      _
    $region43: #{tpu_custom_call.1} parent=1 // pred_check_branch
      %255 = sbr.rel (0) target = $region45
    $region44: #{tpu_custom_call.1} parent=1 // pred_region
      %s257 = ssub.s32 128, 128
      %258 = vsyncadd [#allocation4], %s257
      %s260 = sshll.u32 [#allocation11], 4
      %s261 = int_to_ptr.vmem [resolvable:$true] %s260
      %263 = dma.vmem_to_hbm [thread:$0]  %s261, 128, %s5, [#allocation4]
    $region45: #{tpu_custom_call.1} parent=1 // pred_fallthru
      _
    // Predicated region
    $region46: #{tpu_custom_call.1} parent=1 // pred_check
      _
    $region47: #{tpu_custom_call.1} parent=1 // pred_check_branch
      %265 = sbr.rel (0) target = $region49
    $region48: #{tpu_custom_call.1} parent=1 // pred_region
      %266 = dma.done [#allocation4], 128
    $region49: #{tpu_custom_call.1} parent=1 // pred_fallthru
      _
    %267 = vsyncpa [#allocation3], 1
    %268 = vsyncpa [#allocation6], 1
    %269 = vsyncpa [#allocation9], 1
    %270 = vsyncpa [#allocation4], 1

</llo_original>
